<compile_context>
chip_gen: v7x
topology: tpu7x:2x2x1
jax: 0.10.0
libtpu: 0.0.40
codegen_flags: <defaults>
</compile_context>

<pallas_src>
import jax
import jax.numpy as jnp
from jax.experimental import pallas as pl
from jax.experimental.pallas import tpu as pltpu

HIDDEN = 256          # hidden width of each Q net
HEAD_PAD = 128        # lane-dense fused head width (q1 -> col 0, q2 -> col 1)
SUBLANE = 16          # batch alignment (bf16-friendly sublane packing)


def _round_up(x, m):
    return (x + m - 1) // m * m


# ----------------------------------------------------------------------------
# Kernel
# ----------------------------------------------------------------------------
def critic_kernel(xu_ref, w1_ref, b1_ref, w2a_ref, b2a_ref, w2b_ref, b2b_ref,
                  wha_ref, whb_ref, bh_ref, out_ref):
    # Layer 1, fused over both Q nets: (tB, Dpad) @ (Dpad, 512) -> (tB, 512).
    # xu arrives pre-cast to bf16 by the wrapper.
    h1 = jnp.dot(xu_ref[...], w1_ref[...],
                 preferred_element_type=jnp.float32) + b1_ref[...]
    h1 = jnp.maximum(h1, 0.0).astype(jnp.bfloat16)

    # Layer 2 per Q net: two (tB,256)@(256,256) dots (block-diag fusion would
    # double weight DMA for no MXU benefit).
    h2a = jnp.dot(h1[:, :HIDDEN], w2a_ref[...],
                  preferred_element_type=jnp.float32) + b2a_ref[...]
    h2b = jnp.dot(h1[:, HIDDEN:], w2b_ref[...],
                  preferred_element_type=jnp.float32) + b2b_ref[...]
    h2a = jnp.maximum(h2a, 0.0).astype(jnp.bfloat16)
    h2b = jnp.maximum(h2b, 0.0).astype(jnp.bfloat16)

    # Fused lane-dense heads with NO concat: two (tB,256)@(256,128) dots summed.
    # q1 lands in lane 0 (wha), q2 in lane 1 (whb); other lanes are zero-weight.
    q = (jnp.dot(h2a, wha_ref[...], preferred_element_type=jnp.float32)
         + jnp.dot(h2b, whb_ref[...], preferred_element_type=jnp.float32)
         + bh_ref[...])
    out_ref[...] = q.astype(out_ref.dtype)


# ----------------------------------------------------------------------------
# Parameter packing (done once, outside the per-call path)
# ----------------------------------------------------------------------------
def pack_params(params):
    """Raw PyTorch-layout params -> fused / padded / bf16 kernel params."""
    w1a, b1a, w2a, b2a, w3a, b3a, w1b, b1b, w2b, b2b, w3b, b3b = params
    D = w1a.shape[0]
    D_pad = _round_up(max(D, 128), 128)

    # Fused layer-1 weight for both Q nets: (D_pad, 512) bf16.
    w1 = jnp.concatenate([w1a, w1b], axis=1)                      # (D, 512)
    w1 = jnp.pad(w1, ((0, D_pad - D), (0, 0))).astype(jnp.bfloat16)
    b1 = jnp.concatenate([b1a, b1b], axis=1).astype(jnp.float32)  # (1, 512)

    w2a_p = w2a.astype(jnp.bfloat16)
    w2b_p = w2b.astype(jnp.bfloat16)
    b2a_p = b2a.astype(jnp.float32)
    b2b_p = b2b.astype(jnp.float32)

    # Head weights pre-split per Q net so the kernel never concatenates h2:
    # wha column 0 = q1 head, whb column 1 = q2 head, remaining lanes zero.
    wha = jnp.zeros((HIDDEN, HEAD_PAD), jnp.float32).at[:, 0].set(w3a[:, 0])
    whb = jnp.zeros((HIDDEN, HEAD_PAD), jnp.float32).at[:, 1].set(w3b[:, 0])
    wha = wha.astype(jnp.bfloat16)
    whb = whb.astype(jnp.bfloat16)
    bh = jnp.zeros((1, HEAD_PAD), jnp.float32)
    bh = bh.at[0, 0].set(b3a[0, 0]).at[0, 1].set(b3b[0, 0])

    return (w1, b1, w2a_p, b2a_p, w2b_p, b2b_p, wha, whb, bh), D, D_pad


# ----------------------------------------------------------------------------
# Batch tiling policy
# ----------------------------------------------------------------------------
def _batch_tiling(B):
    """Pick (B_pad, tile_b).

    Small batches: one big tile (kernel is latency-bound, grid-step overhead
    dominates). Large batches (>=512 rows): an EVEN number of <=1024-row tiles
    so the "parallel" grid axis keeps both v7x TensorCores busy while staying
    comfortably inside the default scoped-VMEM limit on every generation.
    """
    B_pad = _round_up(max(B, SUBLANE), SUBLANE)
    if B_pad < 512:
        return B_pad, B_pad
    n_tiles = _round_up(max(2, pl.cdiv(B_pad, 1024)), 2)
    tile_b = _round_up(pl.cdiv(B_pad, n_tiles), SUBLANE)
    return tile_b * n_tiles, tile_b


# ----------------------------------------------------------------------------
# Forward
# ----------------------------------------------------------------------------
def critic_forward(obs, act, packed, D, D_pad):
    """obs: (B, obs_dim), act: (B, act_dim) -> (q1, q2), each (B, 1) f32."""
    w1, b1, w2a, b2a, w2b, b2b, wha, whb, bh = packed
    B = obs.shape[0]
    B_pad, tile_b = _batch_tiling(B)

    # Single fused producer: cast -> concat -> pad emits ONE bf16 HBM buffer
    # (halves the xu DMA vs f32 and avoids extra round-trips before the call).
    xu = jnp.concatenate([obs.astype(jnp.bfloat16),
                          act.astype(jnp.bfloat16)], axis=-1)      # (B, D) bf16
    xu = jnp.pad(xu, ((0, B_pad - B), (0, D_pad - D)))             # (B_pad, D_pad)

    grid = (B_pad // tile_b,)

    const = lambda i: (0, 0)
    resident = dict(pipeline_mode=pl.Buffered(1))   # constant blocks: no 2nd buffer

    flops = 2 * B_pad * (D_pad * 2 * HIDDEN + 2 * HIDDEN * HIDDEN
                         + 2 * HIDDEN * HEAD_PAD)
    bytes_accessed = (
        2 * (D_pad * 2 * HIDDEN + 2 * HIDDEN * HIDDEN + 2 * HIDDEN * HEAD_PAD)  # bf16 W
        + 4 * (2 * HIDDEN + 2 * HIDDEN + HEAD_PAD)                              # f32 biases
        + 2 * B_pad * D_pad                                                     # bf16 xu in
        + 4 * B_pad * HEAD_PAD)                                                 # f32 out

    out = pl.pallas_call(
        critic_kernel,
        out_shape=jax.ShapeDtypeStruct((B_pad, HEAD_PAD), jnp.float32),
        grid=grid,
        in_specs=[
            pl.BlockSpec((tile_b, D_pad), lambda i: (i, 0)),            # xu tile (bf16)
            pl.BlockSpec((D_pad, 2 * HIDDEN), const, **resident),       # w1 (resident)
            pl.BlockSpec((1, 2 * HIDDEN), const, **resident),           # b1
            pl.BlockSpec((HIDDEN, HIDDEN), const, **resident),          # w2 (q1)
            pl.BlockSpec((1, HIDDEN), const, **resident),               # b2 (q1)
            pl.BlockSpec((HIDDEN, HIDDEN), const, **resident),          # w2 (q2)
            pl.BlockSpec((1, HIDDEN), const, **resident),               # b2 (q2)
            pl.BlockSpec((HIDDEN, HEAD_PAD), const, **resident),        # head W (q1)
            pl.BlockSpec((HIDDEN, HEAD_PAD), const, **resident),        # head W (q2)
            pl.BlockSpec((1, HEAD_PAD), const, **resident),             # head bias
        ],
        out_specs=pl.BlockSpec((tile_b, HEAD_PAD), lambda i: (i, 0)),
        compiler_params=pltpu.CompilerParams(
            dimension_semantics=("parallel",)),
        cost_estimate=pl.CostEstimate(
            flops=flops, transcendentals=0, bytes_accessed=bytes_accessed),
    )(xu, w1, b1, w2a, b2a, w2b, b2b, wha, whb, bh)

    q1 = out[:B, 0:1]
    q2 = out[:B, 1:2]
    return q1, q2


# ----------------------------------------------------------------------------
# Params + pure-JAX reference (matching bf16 weight casts / f32 accumulate)
# ----------------------------------------------------------------------------
def init_params(key, obs_dim, act_dim, hidden=HIDDEN):
    """Two independent Q nets, PyTorch-Linear-style init, stored (in, out)."""
    D = obs_dim + act_dim
    ks = jax.random.split(key, 12)

    def lin(kw, kb, fan_in, fan_out):
        bound = 1.0 / jnp.sqrt(fan_in)
        w = jax.random.uniform(kw, (fan_in, fan_out), jnp.float32, -bound, bound)
        b = jax.random.uniform(kb, (1, fan_out), jnp.float32, -bound, bound)
        return w, b

    w1a, b1a = lin(ks[0], ks[1], D, hidden)
    w2a, b2a = lin(ks[2], ks[3], hidden, hidden)
    w3a, b3a = lin(ks[4], ks[5], hidden, 1)
    w1b, b1b = lin(ks[6], ks[7], D, hidden)
    w2b, b2b = lin(ks[8], ks[9], hidden, hidden)
    w3b, b3b = lin(ks[10], ks[11], hidden, 1)
    return (w1a, b1a, w2a, b2a, w3a, b3a, w1b, b1b, w2b, b2b, w3b, b3b)


def critic_forward_ref(obs, act, params):
    """Reference with the same bf16 weight/input, f32-accumulate numerics."""
    w1a, b1a, w2a, b2a, w3a, b3a, w1b, b1b, w2b, b2b, w3b, b3b = params
    xu = jnp.concatenate([obs, act], axis=-1)

    def mlp(w1, b1, w2, b2, w3, b3):
        h = jnp.dot(xu.astype(jnp.bfloat16), w1.astype(jnp.bfloat16),
                    preferred_element_type=jnp.float32) + b1
        h = jnp.maximum(h, 0.0)
        h = jnp.dot(h.astype(jnp.bfloat16), w2.astype(jnp.bfloat16),
                    preferred_element_type=jnp.float32) + b2
        h = jnp.maximum(h, 0.0)
        return jnp.dot(h.astype(jnp.bfloat16), w3.astype(jnp.bfloat16),
                       preferred_element_type=jnp.float32) + b3

    return mlp(w1a, b1a, w2a, b2a, w3a, b3a), mlp(w1b, b1b, w2b, b2b, w3b, b3b)


if __name__ == "__main__":
    key = jax.random.PRNGKey(0)
    k_obs, k_act, k_params = jax.random.split(key, 3)

    B, obs_dim, act_dim = 8, 17, 6
    obs = jax.random.normal(k_obs, (B, obs_dim), dtype=jnp.float32)
    act = jax.random.normal(k_act, (B, act_dim), dtype=jnp.float32)
    params = init_params(k_params, obs_dim, act_dim)

    packed, D, D_pad = pack_params(params)
    fwd = jax.jit(critic_forward, static_argnums=(3, 4))
    q1, q2 = fwd(obs, act, packed, D, D_pad)
    jax.block_until_ready((q1, q2))

    q1_ref, q2_ref = critic_forward_ref(obs, act, params)
    assert q1.shape == (B, 1) and q2.shape == (B, 1)
    assert jnp.allclose(q1, q1_ref, atol=1e-2, rtol=1e-2)
    assert jnp.allclose(q2, q2_ref, atol=1e-2, rtol=1e-2)

    print("KERNEL_OK")
</pallas_src>

<mosaic_0001>
module attributes {stable_mosaic.version = 11 : i64} {
  func.func @critic_kernel(%arg0: i32, %arg1: memref<16x128xbf16, #tpu.memory_space<vmem>>, %arg2: memref<128x512xbf16, #tpu.memory_space<vmem>>, %arg3: memref<1x512xf32, #tpu.memory_space<vmem>>, %arg4: memref<256x256xbf16, #tpu.memory_space<vmem>>, %arg5: memref<1x256xf32, #tpu.memory_space<vmem>>, %arg6: memref<256x256xbf16, #tpu.memory_space<vmem>>, %arg7: memref<1x256xf32, #tpu.memory_space<vmem>>, %arg8: memref<256x128xbf16, #tpu.memory_space<vmem>>, %arg9: memref<256x128xbf16, #tpu.memory_space<vmem>>, %arg10: memref<1x128xf32, #tpu.memory_space<vmem>>, %arg11: memref<16x128xf32, #tpu.memory_space<vmem>>) attributes {dimension_semantics = [#tpu.dimension_semantics<parallel>], iteration_bounds = array<i64: 1>, scalar_prefetch = 0 : i64, scratch_operands = 0 : i64, tpu.core_type = #tpu.core_type<tc>, window_params = [{transform_indices = @transform_0, window_bounds = array<i64: 16, 128>}, {pipeline_mode = #tpu.pipeline_mode<synchronous>, transform_indices = @transform_1, window_bounds = array<i64: 128, 512>}, {pipeline_mode = #tpu.pipeline_mode<synchronous>, transform_indices = @transform_2, window_bounds = array<i64: 1, 512>}, {pipeline_mode = #tpu.pipeline_mode<synchronous>, transform_indices = @transform_3, window_bounds = array<i64: 256, 256>}, {pipeline_mode = #tpu.pipeline_mode<synchronous>, transform_indices = @transform_4, window_bounds = array<i64: 1, 256>}, {pipeline_mode = #tpu.pipeline_mode<synchronous>, transform_indices = @transform_5, window_bounds = array<i64: 256, 256>}, {pipeline_mode = #tpu.pipeline_mode<synchronous>, transform_indices = @transform_6, window_bounds = array<i64: 1, 256>}, {pipeline_mode = #tpu.pipeline_mode<synchronous>, transform_indices = @transform_7, window_bounds = array<i64: 256, 128>}, {pipeline_mode = #tpu.pipeline_mode<synchronous>, transform_indices = @transform_8, window_bounds = array<i64: 256, 128>}, {pipeline_mode = #tpu.pipeline_mode<synchronous>, transform_indices = @transform_9, window_bounds = array<i64: 1, 128>}, {transform_indices = @transform_10, window_bounds = array<i64: 16, 128>}]} {
    %c0 = arith.constant 0 : index
    %c0_0 = arith.constant 0 : index
    %0 = vector.load %arg1[%c0, %c0_0] : memref<16x128xbf16, #tpu.memory_space<vmem>>, vector<16x128xbf16>
    %c0_1 = arith.constant 0 : index
    %c0_2 = arith.constant 0 : index
    %1 = vector.load %arg2[%c0_1, %c0_2] : memref<128x512xbf16, #tpu.memory_space<vmem>>, vector<128x512xbf16>
    %cst = arith.constant dense<0.000000e+00> : vector<16x512xf32>
    %2 = tpu.matmul %0, %1, %cst {dimension_numbers = #tpu.dot_dimension_numbers<[1], [0], [0], [1], [0, 0, 1, 1], [], []>} : vector<16x128xbf16>, vector<128x512xbf16>, vector<16x512xf32> -> vector<16x512xf32>
    %c0_3 = arith.constant 0 : index
    %c0_4 = arith.constant 0 : index
    %3 = vector.load %arg3[%c0_3, %c0_4] : memref<1x512xf32, #tpu.memory_space<vmem>>, vector<1x512xf32>
    %4 = vector.broadcast %3 : vector<1x512xf32> to vector<16x512xf32>
    %5 = arith.addf %2, %4 : vector<16x512xf32>
    %cst_5 = arith.constant 0.000000e+00 : f32
    %6 = vector.broadcast %cst_5 : f32 to vector<16x512xf32>
    %7 = arith.maximumf %5, %6 : vector<16x512xf32>
    %8 = arith.truncf %7 : vector<16x512xf32> to vector<16x512xbf16>
    %9 = vector.extract_strided_slice %8 {offsets = [0, 0], sizes = [16, 256], strides = [1, 1]} : vector<16x512xbf16> to vector<16x256xbf16>
    %c0_6 = arith.constant 0 : index
    %c0_7 = arith.constant 0 : index
    %10 = vector.load %arg4[%c0_6, %c0_7] : memref<256x256xbf16, #tpu.memory_space<vmem>>, vector<256x256xbf16>
    %cst_8 = arith.constant dense<0.000000e+00> : vector<16x256xf32>
    %11 = tpu.matmul %9, %10, %cst_8 {dimension_numbers = #tpu.dot_dimension_numbers<[1], [0], [0], [1], [0, 0, 1, 1], [], []>} : vector<16x256xbf16>, vector<256x256xbf16>, vector<16x256xf32> -> vector<16x256xf32>
    %c0_9 = arith.constant 0 : index
    %c0_10 = arith.constant 0 : index
    %12 = vector.load %arg5[%c0_9, %c0_10] : memref<1x256xf32, #tpu.memory_space<vmem>>, vector<1x256xf32>
    %13 = vector.broadcast %12 : vector<1x256xf32> to vector<16x256xf32>
    %14 = arith.addf %11, %13 : vector<16x256xf32>
    %15 = vector.extract_strided_slice %8 {offsets = [0, 256], sizes = [16, 256], strides = [1, 1]} : vector<16x512xbf16> to vector<16x256xbf16>
    %c0_11 = arith.constant 0 : index
    %c0_12 = arith.constant 0 : index
    %16 = vector.load %arg6[%c0_11, %c0_12] : memref<256x256xbf16, #tpu.memory_space<vmem>>, vector<256x256xbf16>
    %cst_13 = arith.constant dense<0.000000e+00> : vector<16x256xf32>
    %17 = tpu.matmul %15, %16, %cst_13 {dimension_numbers = #tpu.dot_dimension_numbers<[1], [0], [0], [1], [0, 0, 1, 1], [], []>} : vector<16x256xbf16>, vector<256x256xbf16>, vector<16x256xf32> -> vector<16x256xf32>
    %c0_14 = arith.constant 0 : index
    %c0_15 = arith.constant 0 : index
    %18 = vector.load %arg7[%c0_14, %c0_15] : memref<1x256xf32, #tpu.memory_space<vmem>>, vector<1x256xf32>
    %19 = vector.broadcast %18 : vector<1x256xf32> to vector<16x256xf32>
    %20 = arith.addf %17, %19 : vector<16x256xf32>
    %cst_16 = arith.constant 0.000000e+00 : f32
    %21 = vector.broadcast %cst_16 : f32 to vector<16x256xf32>
    %22 = arith.maximumf %14, %21 : vector<16x256xf32>
    %23 = arith.truncf %22 : vector<16x256xf32> to vector<16x256xbf16>
    %cst_17 = arith.constant 0.000000e+00 : f32
    %24 = vector.broadcast %cst_17 : f32 to vector<16x256xf32>
    %25 = arith.maximumf %20, %24 : vector<16x256xf32>
    %26 = arith.truncf %25 : vector<16x256xf32> to vector<16x256xbf16>
    %c0_18 = arith.constant 0 : index
    %c0_19 = arith.constant 0 : index
    %27 = vector.load %arg8[%c0_18, %c0_19] : memref<256x128xbf16, #tpu.memory_space<vmem>>, vector<256x128xbf16>
    %cst_20 = arith.constant dense<0.000000e+00> : vector<16x128xf32>
    %28 = tpu.matmul %23, %27, %cst_20 {dimension_numbers = #tpu.dot_dimension_numbers<[1], [0], [0], [1], [0, 0, 1, 1], [], []>} : vector<16x256xbf16>, vector<256x128xbf16>, vector<16x128xf32> -> vector<16x128xf32>
    %c0_21 = arith.constant 0 : index
    %c0_22 = arith.constant 0 : index
    %29 = vector.load %arg9[%c0_21, %c0_22] : memref<256x128xbf16, #tpu.memory_space<vmem>>, vector<256x128xbf16>
    %cst_23 = arith.constant dense<0.000000e+00> : vector<16x128xf32>
    %30 = tpu.matmul %26, %29, %cst_23 {dimension_numbers = #tpu.dot_dimension_numbers<[1], [0], [0], [1], [0, 0, 1, 1], [], []>} : vector<16x256xbf16>, vector<256x128xbf16>, vector<16x128xf32> -> vector<16x128xf32>
    %31 = arith.addf %28, %30 : vector<16x128xf32>
    %c0_24 = arith.constant 0 : index
    %c0_25 = arith.constant 0 : index
    %32 = vector.load %arg10[%c0_24, %c0_25] : memref<1x128xf32, #tpu.memory_space<vmem>>, vector<1x128xf32>
    %33 = vector.broadcast %32 : vector<1x128xf32> to vector<16x128xf32>
    %34 = arith.addf %31, %33 : vector<16x128xf32>
    %c0_26 = arith.constant 0 : index
    %c0_27 = arith.constant 0 : index
    %35 = vector.load %arg11[%c0_26, %c0_27] : memref<16x128xf32, #tpu.memory_space<vmem>>, vector<16x128xf32>
    tpu.vector_store %arg11[%c0_26, %c0_27], %34 {strides = array<i32>} : memref<16x128xf32, #tpu.memory_space<vmem>>, vector<16x128xf32>,
    return
  }
  func.func @transform_0(%arg0: i32) -> (i32, i32) {
    %c0_i32 = arith.constant 0 : i32
    %c0_i32_0 = arith.constant 0 : i32
    return %arg0, %c0_i32 : i32, i32
  }
  func.func @transform_1(%arg0: i32) -> (i32, i32) {
    %c0_i32 = arith.constant 0 : i32
    %c0_i32_0 = arith.constant 0 : i32
    %c0_i32_1 = arith.constant 0 : i32
    return %c0_i32, %c0_i32_0 : i32, i32
  }
  func.func @transform_2(%arg0: i32) -> (i32, i32) {
    %c0_i32 = arith.constant 0 : i32
    %c0_i32_0 = arith.constant 0 : i32
    %c0_i32_1 = arith.constant 0 : i32
    return %c0_i32, %c0_i32_0 : i32, i32
  }
  func.func @transform_3(%arg0: i32) -> (i32, i32) {
    %c0_i32 = arith.constant 0 : i32
    %c0_i32_0 = arith.constant 0 : i32
    %c0_i32_1 = arith.constant 0 : i32
    return %c0_i32, %c0_i32_0 : i32, i32
  }
  func.func @transform_4(%arg0: i32) -> (i32, i32) {
    %c0_i32 = arith.constant 0 : i32
    %c0_i32_0 = arith.constant 0 : i32
    %c0_i32_1 = arith.constant 0 : i32
    return %c0_i32, %c0_i32_0 : i32, i32
  }
  func.func @transform_5(%arg0: i32) -> (i32, i32) {
    %c0_i32 = arith.constant 0 : i32
    %c0_i32_0 = arith.constant 0 : i32
    %c0_i32_1 = arith.constant 0 : i32
    return %c0_i32, %c0_i32_0 : i32, i32
  }
  func.func @transform_6(%arg0: i32) -> (i32, i32) {
    %c0_i32 = arith.constant 0 : i32
    %c0_i32_0 = arith.constant 0 : i32
    %c0_i32_1 = arith.constant 0 : i32
    return %c0_i32, %c0_i32_0 : i32, i32
  }
  func.func @transform_7(%arg0: i32) -> (i32, i32) {
    %c0_i32 = arith.constant 0 : i32
    %c0_i32_0 = arith.constant 0 : i32
    %c0_i32_1 = arith.constant 0 : i32
    return %c0_i32, %c0_i32_0 : i32, i32
  }
  func.func @transform_8(%arg0: i32) -> (i32, i32) {
    %c0_i32 = arith.constant 0 : i32
    %c0_i32_0 = arith.constant 0 : i32
    %c0_i32_1 = arith.constant 0 : i32
    return %c0_i32, %c0_i32_0 : i32, i32
  }
  func.func @transform_9(%arg0: i32) -> (i32, i32) {
    %c0_i32 = arith.constant 0 : i32
    %c0_i32_0 = arith.constant 0 : i32
    %c0_i32_1 = arith.constant 0 : i32
    return %c0_i32, %c0_i32_0 : i32, i32
  }
  func.func @transform_10(%arg0: i32) -> (i32, i32) {
    %c0_i32 = arith.constant 0 : i32
    %c0_i32_0 = arith.constant 0 : i32
    return %arg0, %c0_i32 : i32, i32
  }
}

</mosaic_0001>

<llo_original>
// kernel: critic_forward.1
$region0: #{critic_forward.1}
  #allocation0 [shape = 'u32[]', space=smem, size = 0x4, offset = 0x4, fixed_abs, tag = 'smem constant byte address 0x4 - core index']
  #allocation1 [shape = 'u32[144,128]{1,0:T(1,128)}', space=vmem, size = 0x12000, scoped, tag = 'internal scratch']
  %s0 = inlined_call_operand.vmem [shape: bf16[16,128], index: 0, kind: input, shape index: {}]
  %s1 = inlined_call_operand.hbm [shape: bf16[128,512], index: 1, kind: input, shape index: {}]
  %s2 = inlined_call_operand.vmem [shape: f32[1,512], index: 2, kind: input, shape index: {}]
  %s3 = inlined_call_operand.hbm [shape: bf16[256,256], index: 3, kind: input, shape index: {}]
  %s4 = inlined_call_operand.vmem [shape: f32[1,256], index: 4, kind: input, shape index: {}]
  %s5 = inlined_call_operand.hbm [shape: bf16[256,256], index: 5, kind: input, shape index: {}]
  %s6 = inlined_call_operand.vmem [shape: f32[1,256], index: 6, kind: input, shape index: {}]
  %s7 = inlined_call_operand.hbm [shape: bf16[256,128], index: 7, kind: input, shape index: {}]
  %s8 = inlined_call_operand.hbm [shape: bf16[256,128], index: 8, kind: input, shape index: {}]
  %s9 = inlined_call_operand.vmem [shape: f32[1,128], index: 9, kind: input, shape index: {}]
  %s10 = inlined_call_operand.vmem [shape: f32[16,128], index: 10, kind: output, shape index: {}]
  %s11 = sld [smem:[#allocation0]]
  $region70: #{critic_forward.1} parent=0
    _
  %s13 = ssub.s32 1, %s11
  %s14 = scalar_select 0, %s13, %s11
  $region1: #{critic_forward.1} parent=0
    #allocation2 [shape = 'u8[131072]{0}', space=vmem, size = 0x20000, scoped, tag = 'input window, operand 1, single buffered']
    #allocation3 [shape = 's32[1]{0}', space=sflag, size = 0x4, scoped, tag = 'scoped memory for critic_forward.1']
    #allocation4 [shape = 'u8[131072]{0}', space=vmem, size = 0x20000, scoped, tag = 'input window, operand 3, single buffered']
    #allocation5 [shape = 's32[1]{0}', space=sflag, size = 0x4, scoped, tag = 'scoped memory for critic_forward.1']
    #allocation6 [shape = 'u8[131072]{0}', space=vmem, size = 0x20000, scoped, tag = 'input window, operand 5, single buffered']
    #allocation7 [shape = 'u8[65536]{0}', space=vmem, size = 0x10000, scoped, tag = 'input window, operand 7, single buffered']
    #allocation8 [shape = 's32[1]{0}', space=sflag, size = 0x4, scoped, tag = 'scoped memory for critic_forward.1']
    #allocation9 [shape = 'u8[65536]{0}', space=vmem, size = 0x10000, scoped, tag = 'input window, operand 8, single buffered']
    %15 = vsyncpa [#allocation3], 0
    %16 = vsyncpa [#allocation5], 0
    %17 = vsyncpa [#allocation8], 0
    // Predicated region
    $region2: #{critic_forward.1} parent=1 // pred_check
      _
    $region3: #{critic_forward.1} parent=1 // pred_check_branch
      %19 = sbr.rel (0) target = $region5
    $region4: #{critic_forward.1} parent=1 // pred_region
      _
    $region5: #{critic_forward.1} parent=1 // pred_fallthru
      _
    // Predicated region
    $region6: #{critic_forward.1} parent=1 // pred_check
      _
    $region7: #{critic_forward.1} parent=1 // pred_check_branch
      %21 = sbr.rel (0) target = $region9
    $region8: #{critic_forward.1} parent=1 // pred_region
      %s23 = ssub.s32 4096, 4096
      %24 = vsyncadd [#allocation3], %s23
      %s25 = sshll.u32 [#allocation2], 4
      %s26 = int_to_ptr.vmem [resolvable:$true] %s25
      %31 = dma.hbm_to_vmem [thread:$0]  %s1, 4096, %s26, [#allocation3], 256, 256, 16
    $region9: #{critic_forward.1} parent=1 // pred_fallthru
      _
    // Predicated region
    $region10: #{critic_forward.1} parent=1 // pred_check
      _
    $region11: #{critic_forward.1} parent=1 // pred_check_branch
      %33 = sbr.rel (0) target = $region13
    $region12: #{critic_forward.1} parent=1 // pred_region
      _
    $region13: #{critic_forward.1} parent=1 // pred_fallthru
      _
    // Predicated region
    $region14: #{critic_forward.1} parent=1 // pred_check
      _
    $region15: #{critic_forward.1} parent=1 // pred_check_branch
      %35 = sbr.rel (0) target = $region17
    $region16: #{critic_forward.1} parent=1 // pred_region
      %s37 = ssub.s32 4096, 4096
      %38 = vsyncadd [#allocation5], %s37
      %s39 = sshll.u32 [#allocation4], 4
      %s40 = int_to_ptr.vmem [resolvable:$true] %s39
      %45 = dma.hbm_to_vmem [thread:$0]  %s3, 4096, %s40, [#allocation5], 128, 128, 8
    $region17: #{critic_forward.1} parent=1 // pred_fallthru
      _
    // Predicated region
    $region18: #{critic_forward.1} parent=1 // pred_check
      _
    $region19: #{critic_forward.1} parent=1 // pred_check_branch
      %47 = sbr.rel (0) target = $region21
    $region20: #{critic_forward.1} parent=1 // pred_region
      _
    $region21: #{critic_forward.1} parent=1 // pred_fallthru
      _
    // Predicated region
    $region22: #{critic_forward.1} parent=1 // pred_check
      _
    $region23: #{critic_forward.1} parent=1 // pred_check_branch
      %49 = sbr.rel (0) target = $region25
    $region24: #{critic_forward.1} parent=1 // pred_region
      %s51 = ssub.s32 4096, 4096
      %52 = vsyncadd [#allocation5], %s51
      %s53 = sshll.u32 [#allocation6], 4
      %s54 = int_to_ptr.vmem [resolvable:$true] %s53
      %59 = dma.hbm_to_vmem [thread:$0]  %s5, 4096, %s54, [#allocation5], 128, 128, 8
    $region25: #{critic_forward.1} parent=1 // pred_fallthru
      _
    // Predicated region
    $region26: #{critic_forward.1} parent=1 // pred_check
      _
    $region27: #{critic_forward.1} parent=1 // pred_check_branch
      %61 = sbr.rel (0) target = $region29
    $region28: #{critic_forward.1} parent=1 // pred_region
      _
    $region29: #{critic_forward.1} parent=1 // pred_fallthru
      _
    // Predicated region
    $region30: #{critic_forward.1} parent=1 // pred_check
      _
    $region31: #{critic_forward.1} parent=1 // pred_check_branch
      %63 = sbr.rel (0) target = $region33
    $region32: #{critic_forward.1} parent=1 // pred_region
      %s65 = ssub.s32 2048, 2048
      %66 = vsyncadd [#allocation8], %s65
      %s67 = sshll.u32 [#allocation7], 4
      %s68 = int_to_ptr.vmem [resolvable:$true] %s67
      %73 = dma.hbm_to_vmem [thread:$0]  %s7, 2048, %s68, [#allocation8], 64, 64, 4
    $region33: #{critic_forward.1} parent=1 // pred_fallthru
      _
    // Predicated region
    $region34: #{critic_forward.1} parent=1 // pred_check
      _
    $region35: #{critic_forward.1} parent=1 // pred_check_branch
      %75 = sbr.rel (0) target = $region37
    $region36: #{critic_forward.1} parent=1 // pred_region
      %s77 = ssub.s32 2048, 2048
      %78 = vsyncadd [#allocation8], %s77
      %s79 = sshll.u32 [#allocation9], 4
      %s80 = int_to_ptr.vmem [resolvable:$true] %s79
      %85 = dma.hbm_to_vmem [thread:$0]  %s8, 2048, %s80, [#allocation8], 64, 64, 4
    $region37: #{critic_forward.1} parent=1 // pred_fallthru
      _
    // Predicated region
    $region38: #{critic_forward.1} parent=1 // pred_check
      _
    $region39: #{critic_forward.1} parent=1 // pred_check_branch
      %87 = sbr.rel (0) target = $region41
    $region40: #{critic_forward.1} parent=1 // pred_region
      _
    $region41: #{critic_forward.1} parent=1 // pred_fallthru
      _
    // Predicated region
    $region42: #{critic_forward.1} parent=1 // pred_check
      _
    $region43: #{critic_forward.1} parent=1 // pred_check_branch
      %89 = sbr.rel (0) target = $region45
    $region44: #{critic_forward.1} parent=1 // pred_region
      %90 = dma.done [#allocation3], 4096
    $region45: #{critic_forward.1} parent=1 // pred_fallthru
      _
    // Predicated region
    $region46: #{critic_forward.1} parent=1 // pred_check
      _
    $region47: #{critic_forward.1} parent=1 // pred_check_branch
      %92 = sbr.rel (0) target = $region49
    $region48: #{critic_forward.1} parent=1 // pred_region
      %93 = dma.done [#allocation5], 4096
    $region49: #{critic_forward.1} parent=1 // pred_fallthru
      _
    // Predicated region
    $region50: #{critic_forward.1} parent=1 // pred_check
      _
    $region51: #{critic_forward.1} parent=1 // pred_check_branch
      %95 = sbr.rel (0) target = $region53
    $region52: #{critic_forward.1} parent=1 // pred_region
      %96 = dma.done [#allocation5], 4096
    $region53: #{critic_forward.1} parent=1 // pred_fallthru
      _
    // Predicated region
    $region54: #{critic_forward.1} parent=1 // pred_check
      _
    $region55: #{critic_forward.1} parent=1 // pred_check_branch
      %98 = sbr.rel (0) target = $region57
    $region56: #{critic_forward.1} parent=1 // pred_region
      %99 = dma.done [#allocation8], 2048
    $region57: #{critic_forward.1} parent=1 // pred_fallthru
      _
    // Predicated region
    $region58: #{critic_forward.1} parent=1 // pred_check
      _
    $region59: #{critic_forward.1} parent=1 // pred_check_branch
      %101 = sbr.rel (0) target = $region61
    $region60: #{critic_forward.1} parent=1 // pred_region
      %102 = dma.done [#allocation8], 2048
    $region61: #{critic_forward.1} parent=1 // pred_fallthru
      _
    %v104 = vld [vmem:[%s0] sm:$0xf]
    %v105 = vld [vmem:[%s0 + $0x4] sm:$0xf]
    %v106 = vld [vmem:[#allocation2] sm:$0xff]
    %v107 = vld [vmem:[#allocation2 + $0x8] sm:$0xff]
    %v108 = vld [vmem:[#allocation2 + $0x10] sm:$0xff]
    %v109 = vld [vmem:[#allocation2 + $0x18] sm:$0xff]
    %v110 = vld [vmem:[#allocation2 + $0x20] sm:$0xff]
    %v111 = vld [vmem:[#allocation2 + $0x28] sm:$0xff]
    %v112 = vld [vmem:[#allocation2 + $0x30] sm:$0xff]
    %v113 = vld [vmem:[#allocation2 + $0x38] sm:$0xff]
    %v114 = vld [vmem:[#allocation2 + $0x40] sm:$0xff]
    %v115 = vld [vmem:[#allocation2 + $0x48] sm:$0xff]
    %v116 = vld [vmem:[#allocation2 + $0x50] sm:$0xff]
    %v117 = vld [vmem:[#allocation2 + $0x58] sm:$0xff]
    %v118 = vld [vmem:[#allocation2 + $0x60] sm:$0xff]
    %v119 = vld [vmem:[#allocation2 + $0x68] sm:$0xff]
    %v120 = vld [vmem:[#allocation2 + $0x70] sm:$0xff]
    %v121 = vld [vmem:[#allocation2 + $0x78] sm:$0xff]
    %v122 = vld [vmem:[#allocation2 + $0x80] sm:$0xff]
    %v123 = vld [vmem:[#allocation2 + $0x88] sm:$0xff]
    %v124 = vld [vmem:[#allocation2 + $0x90] sm:$0xff]
    %v125 = vld [vmem:[#allocation2 + $0x98] sm:$0xff]
    %v126 = vld [vmem:[#allocation2 + $0xa0] sm:$0xff]
    %v127 = vld [vmem:[#allocation2 + $0xa8] sm:$0xff]
    %v128 = vld [vmem:[#allocation2 + $0xb0] sm:$0xff]
    %v129 = vld [vmem:[#allocation2 + $0xb8] sm:$0xff]
    %v130 = vld [vmem:[#allocation2 + $0xc0] sm:$0xff]
    %v131 = vld [vmem:[#allocation2 + $0xc8] sm:$0xff]
    %v132 = vld [vmem:[#allocation2 + $0xd0] sm:$0xff]
    %v133 = vld [vmem:[#allocation2 + $0xd8] sm:$0xff]
    %v134 = vld [vmem:[#allocation2 + $0xe0] sm:$0xff]
    %v135 = vld [vmem:[#allocation2 + $0xe8] sm:$0xff]
    %v136 = vld [vmem:[#allocation2 + $0xf0] sm:$0xff]
    %v137 = vld [vmem:[#allocation2 + $0xf8] sm:$0xff]
    %v138 = vld [vmem:[%s2] sm:$0xf]
    %v140 = vlaneseq
    %v141 = vshrl.u32 %v140, 7
    %v142 = vsub.s32 0, %v141
    %v143 = vrot.slane %v138, %v142
    %v144 = vlaneseq
    %v145 = vshrl.u32 %v144, 7
    %v146 = vsub.s32 1, %v145
    %v147 = vrot.slane %v138, %v146
    %v148 = vlaneseq
    %v149 = vshrl.u32 %v148, 7
    %v150 = vsub.s32 2, %v149
    %v151 = vrot.slane %v138, %v150
    %v152 = vlaneseq
    %v153 = vshrl.u32 %v152, 7
    %v154 = vsub.s32 3, %v153
    %v155 = vrot.slane %v138, %v154
    %v162 = vunpack.c.l.b16 %v104
    %v163 = vunpack.c.l.b16 %v105
    %v164 = vpack.c.b16 %v163, %v162
    %v198 = vunpack.c.l.b16 %v106
    %v199 = vunpack.c.h.b16 %v106
    %v200 = vunpack.c.l.b16 %v107
    %v201 = vunpack.c.h.b16 %v107
    %v202 = vunpack.c.l.b16 %v108
    %v203 = vunpack.c.h.b16 %v108
    %v204 = vunpack.c.l.b16 %v109
    %v205 = vunpack.c.h.b16 %v109
    %v206 = vunpack.c.l.b16 %v110
    %v207 = vunpack.c.h.b16 %v110
    %v208 = vunpack.c.l.b16 %v111
    %v209 = vunpack.c.h.b16 %v111
    %v210 = vunpack.c.l.b16 %v112
    %v211 = vunpack.c.h.b16 %v112
    %v212 = vunpack.c.l.b16 %v113
    %v213 = vunpack.c.h.b16 %v113
    %v214 = vunpack.c.l.b16 %v114
    %v215 = vunpack.c.h.b16 %v114
    %v216 = vunpack.c.l.b16 %v115
    %v217 = vunpack.c.h.b16 %v115
    %v218 = vunpack.c.l.b16 %v116
    %v219 = vunpack.c.h.b16 %v116
    %v220 = vunpack.c.l.b16 %v117
    %v221 = vunpack.c.h.b16 %v117
    %v222 = vunpack.c.l.b16 %v118
    %v223 = vunpack.c.h.b16 %v118
    %v224 = vunpack.c.l.b16 %v119
    %v225 = vunpack.c.h.b16 %v119
    %v226 = vunpack.c.l.b16 %v120
    %v227 = vunpack.c.h.b16 %v120
    %v228 = vunpack.c.l.b16 %v121
    %v229 = vunpack.c.h.b16 %v121
    %v230 = vunpack.c.l.b16 %v122
    %v231 = vunpack.c.h.b16 %v122
    %v232 = vunpack.c.l.b16 %v123
    %v233 = vunpack.c.h.b16 %v123
    %v234 = vunpack.c.l.b16 %v124
    %v235 = vunpack.c.h.b16 %v124
    %v236 = vunpack.c.l.b16 %v125
    %v237 = vunpack.c.h.b16 %v125
    %v238 = vunpack.c.l.b16 %v126
    %v239 = vunpack.c.h.b16 %v126
    %v240 = vunpack.c.l.b16 %v127
    %v241 = vunpack.c.h.b16 %v127
    %v242 = vunpack.c.l.b16 %v128
    %v243 = vunpack.c.h.b16 %v128
    %v244 = vunpack.c.l.b16 %v129
    %v245 = vunpack.c.h.b16 %v129
    %v246 = vunpack.c.l.b16 %v130
    %v247 = vunpack.c.h.b16 %v130
    %v248 = vunpack.c.l.b16 %v131
    %v249 = vunpack.c.h.b16 %v131
    %v250 = vunpack.c.l.b16 %v132
    %v251 = vunpack.c.h.b16 %v132
    %v252 = vunpack.c.l.b16 %v133
    %v253 = vunpack.c.h.b16 %v133
    %v254 = vunpack.c.l.b16 %v134
    %v255 = vunpack.c.h.b16 %v134
    %v256 = vunpack.c.l.b16 %v135
    %v257 = vunpack.c.h.b16 %v135
    %v258 = vunpack.c.l.b16 %v136
    %v259 = vunpack.c.h.b16 %v136
    %v260 = vunpack.c.l.b16 %v137
    %v261 = vunpack.c.h.b16 %v137
    %v262 = vpack.c.b16 %v202, %v198
    %v263 = vpack.c.b16 %v203, %v199
    %v264 = vpack.c.b16 %v204, %v200
    %v265 = vpack.c.b16 %v205, %v201
    %v266 = vpack.c.b16 %v210, %v206
    %v267 = vpack.c.b16 %v211, %v207
    %v268 = vpack.c.b16 %v212, %v208
    %v269 = vpack.c.b16 %v213, %v209
    %v270 = vpack.c.b16 %v218, %v214
    %v271 = vpack.c.b16 %v219, %v215
    %v272 = vpack.c.b16 %v220, %v216
    %v273 = vpack.c.b16 %v221, %v217
    %v274 = vpack.c.b16 %v226, %v222
    %v275 = vpack.c.b16 %v227, %v223
    %v276 = vpack.c.b16 %v228, %v224
    %v277 = vpack.c.b16 %v229, %v225
    %v278 = vpack.c.b16 %v234, %v230
    %v279 = vpack.c.b16 %v235, %v231
    %v280 = vpack.c.b16 %v236, %v232
    %v281 = vpack.c.b16 %v237, %v233
    %v282 = vpack.c.b16 %v242, %v238
    %v283 = vpack.c.b16 %v243, %v239
    %v284 = vpack.c.b16 %v244, %v240
    %v285 = vpack.c.b16 %v245, %v241
    %v286 = vpack.c.b16 %v250, %v246
    %v287 = vpack.c.b16 %v251, %v247
    %v288 = vpack.c.b16 %v252, %v248
    %v289 = vpack.c.b16 %v253, %v249
    %v290 = vpack.c.b16 %v258, %v254
    %v291 = vpack.c.b16 %v259, %v255
    %v292 = vpack.c.b16 %v260, %v256
    %v293 = vpack.c.b16 %v261, %v257
    %326 = vmatprep.subr.bf16.mxu0 %v263
    %327 = vmatpush1.bf16.msra.mxu0 %v262
    %328 = vmatprep.subr.bf16.mxu0 %v267
    %329 = vmatpush1.bf16.msra.mxu0 %v266
    %330 = vmatprep.subr.bf16.mxu0 %v271
    %331 = vmatpush1.bf16.msra.mxu0 %v270
    %332 = vmatprep.subr.bf16.mxu0 %v275
    %333 = vmatpush1.bf16.msra.mxu0 %v274
    %334 = vmatprep.subr.bf16.mxu0 %v279
    %335 = vmatpush1.bf16.msra.mxu0 %v278
    %336 = vmatprep.subr.bf16.mxu0 %v283
    %337 = vmatpush1.bf16.msra.mxu0 %v282
    %338 = vmatprep.subr.bf16.mxu0 %v287
    %339 = vmatpush1.bf16.msra.mxu0 %v286
    %340 = vmatprep.subr.bf16.mxu0 %v291
    %341 = vmatpush1.bf16.msra.mxu0 %v290
    %342 = vmatprep.subr.bf16.mxu0 0
    %343 = vmatpush1.bf16.msra.mxu0 0
    %344 = vmatprep.subr.bf16.mxu0 0
    %345 = vmatpush1.bf16.msra.mxu0 0
    %346 = vmatprep.subr.bf16.mxu0 0
    %347 = vmatpush1.bf16.msra.mxu0 0
    %348 = vmatprep.subr.bf16.mxu0 0
    %349 = vmatpush1.bf16.msra.mxu0 0
    %350 = vmatprep.subr.bf16.mxu0 0
    %351 = vmatpush1.bf16.msra.mxu0 0
    %352 = vmatprep.subr.bf16.mxu0 0
    %353 = vmatpush1.bf16.msra.mxu0 0
    %354 = vmatprep.subr.bf16.mxu0 0
    %355 = vmatpush1.bf16.msra.mxu0 0
    %356 = vmatprep.subr.bf16.mxu0 0
    %357 = vmatpush1.bf16.msra.mxu0 0
    %358 = vmatprep.mubr.bf16.mxu0 0
    %359 = vmatmul.mubr.bf16.gmra.mrb[0].mxu0 %v164
    %v360 = vpop.f32.mrb[0].mxu0
    %v361 = vadd.f32 %v143, %v360
    %v362 = vpop.f32.mrb[0].mxu0
    %v363 = vadd.f32 %v147, %v362
    %v364 = vpop.f32.mrb[0].mxu0
    %v365 = vadd.f32 %v143, %v364
    %v366 = vpop.f32.mrb[0].mxu0
    %v367 = vadd.f32 %v147, %v366
    %368 = vdwg.mxu0
    %369 = vmatprep.subr.bf16.mxu0 %v265
    %370 = vmatpush1.bf16.msra.mxu0 %v264
    %371 = vmatprep.subr.bf16.mxu0 %v269
    %372 = vmatpush1.bf16.msra.mxu0 %v268
    %373 = vmatprep.subr.bf16.mxu0 %v273
    %374 = vmatpush1.bf16.msra.mxu0 %v272
    %375 = vmatprep.subr.bf16.mxu0 %v277
    %376 = vmatpush1.bf16.msra.mxu0 %v276
    %377 = vmatprep.subr.bf16.mxu0 %v281
    %378 = vmatpush1.bf16.msra.mxu0 %v280
    %379 = vmatprep.subr.bf16.mxu0 %v285
    %380 = vmatpush1.bf16.msra.mxu0 %v284
    %381 = vmatprep.subr.bf16.mxu0 %v289
    %382 = vmatpush1.bf16.msra.mxu0 %v288
    %383 = vmatprep.subr.bf16.mxu0 %v293
    %384 = vmatpush1.bf16.msra.mxu0 %v292
    %385 = vmatprep.subr.bf16.mxu0 0
    %386 = vmatpush1.bf16.msra.mxu0 0
    %387 = vmatprep.subr.bf16.mxu0 0
    %388 = vmatpush1.bf16.msra.mxu0 0
    %389 = vmatprep.subr.bf16.mxu0 0
    %390 = vmatpush1.bf16.msra.mxu0 0
    %391 = vmatprep.subr.bf16.mxu0 0
    %392 = vmatpush1.bf16.msra.mxu0 0
    %393 = vmatprep.subr.bf16.mxu0 0
    %394 = vmatpush1.bf16.msra.mxu0 0
    %395 = vmatprep.subr.bf16.mxu0 0
    %396 = vmatpush1.bf16.msra.mxu0 0
    %397 = vmatprep.subr.bf16.mxu0 0
    %398 = vmatpush1.bf16.msra.mxu0 0
    %399 = vmatprep.subr.bf16.mxu0 0
    %400 = vmatpush1.bf16.msra.mxu0 0
    %401 = vmatprep.mubr.bf16.mxu0 0
    %402 = vmatmul.mubr.bf16.gmra.mrb[0].mxu0 %v164
    %v403 = vpop.f32.mrb[0].mxu0
    %v404 = vadd.f32 %v151, %v403
    %v405 = vpop.f32.mrb[0].mxu0
    %v406 = vadd.f32 %v155, %v405
    %v407 = vpop.f32.mrb[0].mxu0
    %v408 = vadd.f32 %v151, %v407
    %v409 = vpop.f32.mrb[0].mxu0
    %v410 = vadd.f32 %v155, %v409
    %411 = vdwg.mxu0
    %v412 = vmax.f32 %v361, 0.0
    %v413 = vmax.f32 %v363, 0.0
    %v414 = vmax.f32 %v404, 0.0
    %v415 = vmax.f32 %v406, 0.0
    %v416 = vmax.f32 %v365, 0.0
    %v417 = vmax.f32 %v367, 0.0
    %v418 = vmax.f32 %v408, 0.0
    %v419 = vmax.f32 %v410, 0.0
    %v420 = vpack.c.bf16 %v416, %v412
    %v421 = vpack.c.bf16 %v417, %v413
    %v422 = vpack.c.bf16 %v418, %v414
    %v423 = vpack.c.bf16 %v419, %v415
    %v424 = vld [vmem:[#allocation4] sm:$0xff]
    %v425 = vld [vmem:[#allocation4 + $0x8] sm:$0xff]
    %v426 = vld [vmem:[#allocation4 + $0x10] sm:$0xff]
    %v427 = vld [vmem:[#allocation4 + $0x18] sm:$0xff]
    %v428 = vld [vmem:[#allocation4 + $0x20] sm:$0xff]
    %v429 = vld [vmem:[#allocation4 + $0x28] sm:$0xff]
    %v430 = vld [vmem:[#allocation4 + $0x30] sm:$0xff]
    %v431 = vld [vmem:[#allocation4 + $0x38] sm:$0xff]
    %v432 = vld [vmem:[#allocation4 + $0x40] sm:$0xff]
    %v433 = vld [vmem:[#allocation4 + $0x48] sm:$0xff]
    %v434 = vld [vmem:[#allocation4 + $0x50] sm:$0xff]
    %v435 = vld [vmem:[#allocation4 + $0x58] sm:$0xff]
    %v436 = vld [vmem:[#allocation4 + $0x60] sm:$0xff]
    %v437 = vld [vmem:[#allocation4 + $0x68] sm:$0xff]
    %v438 = vld [vmem:[#allocation4 + $0x70] sm:$0xff]
    %v439 = vld [vmem:[#allocation4 + $0x78] sm:$0xff]
    %v440 = vld [vmem:[#allocation4 + $0x80] sm:$0xff]
    %v441 = vld [vmem:[#allocation4 + $0x88] sm:$0xff]
    %v442 = vld [vmem:[#allocation4 + $0x90] sm:$0xff]
    %v443 = vld [vmem:[#allocation4 + $0x98] sm:$0xff]
    %v444 = vld [vmem:[#allocation4 + $0xa0] sm:$0xff]
    %v445 = vld [vmem:[#allocation4 + $0xa8] sm:$0xff]
    %v446 = vld [vmem:[#allocation4 + $0xb0] sm:$0xff]
    %v447 = vld [vmem:[#allocation4 + $0xb8] sm:$0xff]
    %v448 = vld [vmem:[#allocation4 + $0xc0] sm:$0xff]
    %v449 = vld [vmem:[#allocation4 + $0xc8] sm:$0xff]
    %v450 = vld [vmem:[#allocation4 + $0xd0] sm:$0xff]
    %v451 = vld [vmem:[#allocation4 + $0xd8] sm:$0xff]
    %v452 = vld [vmem:[#allocation4 + $0xe0] sm:$0xff]
    %v453 = vld [vmem:[#allocation4 + $0xe8] sm:$0xff]
    %v454 = vld [vmem:[#allocation4 + $0xf0] sm:$0xff]
    %v455 = vld [vmem:[#allocation4 + $0xf8] sm:$0xff]
    %v456 = vld [vmem:[%s4] sm:$0x3]
    %v458 = vlaneseq
    %v459 = vshrl.u32 %v458, 7
    %v460 = vsub.s32 0, %v459
    %v461 = vrot.slane %v456, %v460
    %v462 = vlaneseq
    %v463 = vshrl.u32 %v462, 7
    %v464 = vsub.s32 1, %v463
    %v465 = vrot.slane %v456, %v464
    %v500 = vunpack.c.l.b16 %v424
    %v501 = vunpack.c.h.b16 %v424
    %v502 = vunpack.c.l.b16 %v425
    %v503 = vunpack.c.h.b16 %v425
    %v504 = vunpack.c.l.b16 %v426
    %v505 = vunpack.c.h.b16 %v426
    %v506 = vunpack.c.l.b16 %v427
    %v507 = vunpack.c.h.b16 %v427
    %v508 = vunpack.c.l.b16 %v428
    %v509 = vunpack.c.h.b16 %v428
    %v510 = vunpack.c.l.b16 %v429
    %v511 = vunpack.c.h.b16 %v429
    %v512 = vunpack.c.l.b16 %v430
    %v513 = vunpack.c.h.b16 %v430
    %v514 = vunpack.c.l.b16 %v431
    %v515 = vunpack.c.h.b16 %v431
    %v516 = vunpack.c.l.b16 %v432
    %v517 = vunpack.c.h.b16 %v432
    %v518 = vunpack.c.l.b16 %v433
    %v519 = vunpack.c.h.b16 %v433
    %v520 = vunpack.c.l.b16 %v434
    %v521 = vunpack.c.h.b16 %v434
    %v522 = vunpack.c.l.b16 %v435
    %v523 = vunpack.c.h.b16 %v435
    %v524 = vunpack.c.l.b16 %v436
    %v525 = vunpack.c.h.b16 %v436
    %v526 = vunpack.c.l.b16 %v437
    %v527 = vunpack.c.h.b16 %v437
    %v528 = vunpack.c.l.b16 %v438
    %v529 = vunpack.c.h.b16 %v438
    %v530 = vunpack.c.l.b16 %v439
    %v531 = vunpack.c.h.b16 %v439
    %v532 = vunpack.c.l.b16 %v440
    %v533 = vunpack.c.h.b16 %v440
    %v534 = vunpack.c.l.b16 %v441
    %v535 = vunpack.c.h.b16 %v441
    %v536 = vunpack.c.l.b16 %v442
    %v537 = vunpack.c.h.b16 %v442
    %v538 = vunpack.c.l.b16 %v443
    %v539 = vunpack.c.h.b16 %v443
    %v540 = vunpack.c.l.b16 %v444
    %v541 = vunpack.c.h.b16 %v444
    %v542 = vunpack.c.l.b16 %v445
    %v543 = vunpack.c.h.b16 %v445
    %v544 = vunpack.c.l.b16 %v446
    %v545 = vunpack.c.h.b16 %v446
    %v546 = vunpack.c.l.b16 %v447
    %v547 = vunpack.c.h.b16 %v447
    %v548 = vunpack.c.l.b16 %v448
    %v549 = vunpack.c.h.b16 %v448
    %v550 = vunpack.c.l.b16 %v449
    %v551 = vunpack.c.h.b16 %v449
    %v552 = vunpack.c.l.b16 %v450
    %v553 = vunpack.c.h.b16 %v450
    %v554 = vunpack.c.l.b16 %v451
    %v555 = vunpack.c.h.b16 %v451
    %v556 = vunpack.c.l.b16 %v452
    %v557 = vunpack.c.h.b16 %v452
    %v558 = vunpack.c.l.b16 %v453
    %v559 = vunpack.c.h.b16 %v453
    %v560 = vunpack.c.l.b16 %v454
    %v561 = vunpack.c.h.b16 %v454
    %v562 = vunpack.c.l.b16 %v455
    %v563 = vunpack.c.h.b16 %v455
    %v564 = vpack.c.b16 %v502, %v500
    %v565 = vpack.c.b16 %v503, %v501
    %v566 = vpack.c.b16 %v506, %v504
    %v567 = vpack.c.b16 %v507, %v505
    %v568 = vpack.c.b16 %v510, %v508
    %v569 = vpack.c.b16 %v511, %v509
    %v570 = vpack.c.b16 %v514, %v512
    %v571 = vpack.c.b16 %v515, %v513
    %v572 = vpack.c.b16 %v518, %v516
    %v573 = vpack.c.b16 %v519, %v517
    %v574 = vpack.c.b16 %v522, %v520
    %v575 = vpack.c.b16 %v523, %v521
    %v576 = vpack.c.b16 %v526, %v524
    %v577 = vpack.c.b16 %v527, %v525
    %v578 = vpack.c.b16 %v530, %v528
    %v579 = vpack.c.b16 %v531, %v529
    %v580 = vpack.c.b16 %v534, %v532
    %v581 = vpack.c.b16 %v535, %v533
    %v582 = vpack.c.b16 %v538, %v536
    %v583 = vpack.c.b16 %v539, %v537
    %v584 = vpack.c.b16 %v542, %v540
    %v585 = vpack.c.b16 %v543, %v541
    %v586 = vpack.c.b16 %v546, %v544
    %v587 = vpack.c.b16 %v547, %v545
    %v588 = vpack.c.b16 %v550, %v548
    %v589 = vpack.c.b16 %v551, %v549
    %v590 = vpack.c.b16 %v554, %v552
    %v591 = vpack.c.b16 %v555, %v553
    %v592 = vpack.c.b16 %v558, %v556
    %v593 = vpack.c.b16 %v559, %v557
    %v594 = vpack.c.b16 %v562, %v560
    %v595 = vpack.c.b16 %v563, %v561
    %628 = vmatprep.subr.bf16.mxu0 %v565
    %629 = vmatpush1.bf16.msra.mxu0 %v564
    %630 = vmatprep.subr.bf16.mxu0 %v567
    %631 = vmatpush1.bf16.msra.mxu0 %v566
    %632 = vmatprep.subr.bf16.mxu0 %v569
    %633 = vmatpush1.bf16.msra.mxu0 %v568
    %634 = vmatprep.subr.bf16.mxu0 %v571
    %635 = vmatpush1.bf16.msra.mxu0 %v570
    %636 = vmatprep.subr.bf16.mxu0 %v573
    %637 = vmatpush1.bf16.msra.mxu0 %v572
    %638 = vmatprep.subr.bf16.mxu0 %v575
    %639 = vmatpush1.bf16.msra.mxu0 %v574
    %640 = vmatprep.subr.bf16.mxu0 %v577
    %641 = vmatpush1.bf16.msra.mxu0 %v576
    %642 = vmatprep.subr.bf16.mxu0 %v579
    %643 = vmatpush1.bf16.msra.mxu0 %v578
    %644 = vmatprep.subr.bf16.mxu0 %v581
    %645 = vmatpush1.bf16.msra.mxu0 %v580
    %646 = vmatprep.subr.bf16.mxu0 %v583
    %647 = vmatpush1.bf16.msra.mxu0 %v582
    %648 = vmatprep.subr.bf16.mxu0 %v585
    %649 = vmatpush1.bf16.msra.mxu0 %v584
    %650 = vmatprep.subr.bf16.mxu0 %v587
    %651 = vmatpush1.bf16.msra.mxu0 %v586
    %652 = vmatprep.subr.bf16.mxu0 %v589
    %653 = vmatpush1.bf16.msra.mxu0 %v588
    %654 = vmatprep.subr.bf16.mxu0 %v591
    %655 = vmatpush1.bf16.msra.mxu0 %v590
    %656 = vmatprep.subr.bf16.mxu0 %v593
    %657 = vmatpush1.bf16.msra.mxu0 %v592
    %658 = vmatprep.subr.bf16.mxu0 %v595
    %659 = vmatpush1.bf16.msra.mxu0 %v594
    %660 = vmatprep.mubr.bf16.mxu0 %v421
    %661 = vmatmul.mubr.bf16.gmra.mrb[0].mxu0 %v420
    %v662 = vpop.f32.mrb[0].mxu0
    %v663 = vadd.f32 %v461, %v662
    %v664 = vpop.f32.mrb[0].mxu0
    %v665 = vadd.f32 %v465, %v664
    %v666 = vpop.f32.mrb[0].mxu0
    %v667 = vadd.f32 %v461, %v666
    %v668 = vpop.f32.mrb[0].mxu0
    %v669 = vadd.f32 %v465, %v668
    %670 = vdwg.mxu0
    %v671 = vld [vmem:[#allocation6] sm:$0xff]
    %v672 = vld [vmem:[#allocation6 + $0x8] sm:$0xff]
    %v673 = vld [vmem:[#allocation6 + $0x10] sm:$0xff]
    %v674 = vld [vmem:[#allocation6 + $0x18] sm:$0xff]
    %v675 = vld [vmem:[#allocation6 + $0x20] sm:$0xff]
    %v676 = vld [vmem:[#allocation6 + $0x28] sm:$0xff]
    %v677 = vld [vmem:[#allocation6 + $0x30] sm:$0xff]
    %v678 = vld [vmem:[#allocation6 + $0x38] sm:$0xff]
    %v679 = vld [vmem:[#allocation6 + $0x40] sm:$0xff]
    %v680 = vld [vmem:[#allocation6 + $0x48] sm:$0xff]
    %v681 = vld [vmem:[#allocation6 + $0x50] sm:$0xff]
    %v682 = vld [vmem:[#allocation6 + $0x58] sm:$0xff]
    %v683 = vld [vmem:[#allocation6 + $0x60] sm:$0xff]
    %v684 = vld [vmem:[#allocation6 + $0x68] sm:$0xff]
    %v685 = vld [vmem:[#allocation6 + $0x70] sm:$0xff]
    %v686 = vld [vmem:[#allocation6 + $0x78] sm:$0xff]
    %v687 = vld [vmem:[#allocation6 + $0x80] sm:$0xff]
    %v688 = vld [vmem:[#allocation6 + $0x88] sm:$0xff]
    %v689 = vld [vmem:[#allocation6 + $0x90] sm:$0xff]
    %v690 = vld [vmem:[#allocation6 + $0x98] sm:$0xff]
    %v691 = vld [vmem:[#allocation6 + $0xa0] sm:$0xff]
    %v692 = vld [vmem:[#allocation6 + $0xa8] sm:$0xff]
    %v693 = vld [vmem:[#allocation6 + $0xb0] sm:$0xff]
    %v694 = vld [vmem:[#allocation6 + $0xb8] sm:$0xff]
    %v695 = vld [vmem:[#allocation6 + $0xc0] sm:$0xff]
    %v696 = vld [vmem:[#allocation6 + $0xc8] sm:$0xff]
    %v697 = vld [vmem:[#allocation6 + $0xd0] sm:$0xff]
    %v698 = vld [vmem:[#allocation6 + $0xd8] sm:$0xff]
    %v699 = vld [vmem:[#allocation6 + $0xe0] sm:$0xff]
    %v700 = vld [vmem:[#allocation6 + $0xe8] sm:$0xff]
    %v701 = vld [vmem:[#allocation6 + $0xf0] sm:$0xff]
    %v702 = vld [vmem:[#allocation6 + $0xf8] sm:$0xff]
    %v703 = vld [vmem:[%s6] sm:$0x3]
    %v705 = vlaneseq
    %v706 = vshrl.u32 %v705, 7
    %v707 = vsub.s32 0, %v706
    %v708 = vrot.slane %v703, %v707
    %v709 = vlaneseq
    %v710 = vshrl.u32 %v709, 7
    %v711 = vsub.s32 1, %v710
    %v712 = vrot.slane %v703, %v711
    %v747 = vunpack.c.l.b16 %v671
    %v748 = vunpack.c.h.b16 %v671
    %v749 = vunpack.c.l.b16 %v672
    %v750 = vunpack.c.h.b16 %v672
    %v751 = vunpack.c.l.b16 %v673
    %v752 = vunpack.c.h.b16 %v673
    %v753 = vunpack.c.l.b16 %v674
    %v754 = vunpack.c.h.b16 %v674
    %v755 = vunpack.c.l.b16 %v675
    %v756 = vunpack.c.h.b16 %v675
    %v757 = vunpack.c.l.b16 %v676
    %v758 = vunpack.c.h.b16 %v676
    %v759 = vunpack.c.l.b16 %v677
    %v760 = vunpack.c.h.b16 %v677
    %v761 = vunpack.c.l.b16 %v678
    %v762 = vunpack.c.h.b16 %v678
    %v763 = vunpack.c.l.b16 %v679
    %v764 = vunpack.c.h.b16 %v679
    %v765 = vunpack.c.l.b16 %v680
    %v766 = vunpack.c.h.b16 %v680
    %v767 = vunpack.c.l.b16 %v681
    %v768 = vunpack.c.h.b16 %v681
    %v769 = vunpack.c.l.b16 %v682
    %v770 = vunpack.c.h.b16 %v682
    %v771 = vunpack.c.l.b16 %v683
    %v772 = vunpack.c.h.b16 %v683
    %v773 = vunpack.c.l.b16 %v684
    %v774 = vunpack.c.h.b16 %v684
    %v775 = vunpack.c.l.b16 %v685
    %v776 = vunpack.c.h.b16 %v685
    %v777 = vunpack.c.l.b16 %v686
    %v778 = vunpack.c.h.b16 %v686
    %v779 = vunpack.c.l.b16 %v687
    %v780 = vunpack.c.h.b16 %v687
    %v781 = vunpack.c.l.b16 %v688
    %v782 = vunpack.c.h.b16 %v688
    %v783 = vunpack.c.l.b16 %v689
    %v784 = vunpack.c.h.b16 %v689
    %v785 = vunpack.c.l.b16 %v690
    %v786 = vunpack.c.h.b16 %v690
    %v787 = vunpack.c.l.b16 %v691
    %v788 = vunpack.c.h.b16 %v691
    %v789 = vunpack.c.l.b16 %v692
    %v790 = vunpack.c.h.b16 %v692
    %v791 = vunpack.c.l.b16 %v693
    %v792 = vunpack.c.h.b16 %v693
    %v793 = vunpack.c.l.b16 %v694
    %v794 = vunpack.c.h.b16 %v694
    %v795 = vunpack.c.l.b16 %v695
    %v796 = vunpack.c.h.b16 %v695
    %v797 = vunpack.c.l.b16 %v696
    %v798 = vunpack.c.h.b16 %v696
    %v799 = vunpack.c.l.b16 %v697
    %v800 = vunpack.c.h.b16 %v697
    %v801 = vunpack.c.l.b16 %v698
    %v802 = vunpack.c.h.b16 %v698
    %v803 = vunpack.c.l.b16 %v699
    %v804 = vunpack.c.h.b16 %v699
    %v805 = vunpack.c.l.b16 %v700
    %v806 = vunpack.c.h.b16 %v700
    %v807 = vunpack.c.l.b16 %v701
    %v808 = vunpack.c.h.b16 %v701
    %v809 = vunpack.c.l.b16 %v702
    %v810 = vunpack.c.h.b16 %v702
    %v811 = vpack.c.b16 %v749, %v747
    %v812 = vpack.c.b16 %v750, %v748
    %v813 = vpack.c.b16 %v753, %v751
    %v814 = vpack.c.b16 %v754, %v752
    %v815 = vpack.c.b16 %v757, %v755
    %v816 = vpack.c.b16 %v758, %v756
    %v817 = vpack.c.b16 %v761, %v759
    %v818 = vpack.c.b16 %v762, %v760
    %v819 = vpack.c.b16 %v765, %v763
    %v820 = vpack.c.b16 %v766, %v764
    %v821 = vpack.c.b16 %v769, %v767
    %v822 = vpack.c.b16 %v770, %v768
    %v823 = vpack.c.b16 %v773, %v771
    %v824 = vpack.c.b16 %v774, %v772
    %v825 = vpack.c.b16 %v777, %v775
    %v826 = vpack.c.b16 %v778, %v776
    %v827 = vpack.c.b16 %v781, %v779
    %v828 = vpack.c.b16 %v782, %v780
    %v829 = vpack.c.b16 %v785, %v783
    %v830 = vpack.c.b16 %v786, %v784
    %v831 = vpack.c.b16 %v789, %v787
    %v832 = vpack.c.b16 %v790, %v788
    %v833 = vpack.c.b16 %v793, %v791
    %v834 = vpack.c.b16 %v794, %v792
    %v835 = vpack.c.b16 %v797, %v795
    %v836 = vpack.c.b16 %v798, %v796
    %v837 = vpack.c.b16 %v801, %v799
    %v838 = vpack.c.b16 %v802, %v800
    %v839 = vpack.c.b16 %v805, %v803
    %v840 = vpack.c.b16 %v806, %v804
    %v841 = vpack.c.b16 %v809, %v807
    %v842 = vpack.c.b16 %v810, %v808
    %875 = vmatprep.subr.bf16.mxu0 %v812
    %876 = vmatpush1.bf16.msra.mxu0 %v811
    %877 = vmatprep.subr.bf16.mxu0 %v814
    %878 = vmatpush1.bf16.msra.mxu0 %v813
    %879 = vmatprep.subr.bf16.mxu0 %v816
    %880 = vmatpush1.bf16.msra.mxu0 %v815
    %881 = vmatprep.subr.bf16.mxu0 %v818
    %882 = vmatpush1.bf16.msra.mxu0 %v817
    %883 = vmatprep.subr.bf16.mxu0 %v820
    %884 = vmatpush1.bf16.msra.mxu0 %v819
    %885 = vmatprep.subr.bf16.mxu0 %v822
    %886 = vmatpush1.bf16.msra.mxu0 %v821
    %887 = vmatprep.subr.bf16.mxu0 %v824
    %888 = vmatpush1.bf16.msra.mxu0 %v823
    %889 = vmatprep.subr.bf16.mxu0 %v826
    %890 = vmatpush1.bf16.msra.mxu0 %v825
    %891 = vmatprep.subr.bf16.mxu0 %v828
    %892 = vmatpush1.bf16.msra.mxu0 %v827
    %893 = vmatprep.subr.bf16.mxu0 %v830
    %894 = vmatpush1.bf16.msra.mxu0 %v829
    %895 = vmatprep.subr.bf16.mxu0 %v832
    %896 = vmatpush1.bf16.msra.mxu0 %v831
    %897 = vmatprep.subr.bf16.mxu0 %v834
    %898 = vmatpush1.bf16.msra.mxu0 %v833
    %899 = vmatprep.subr.bf16.mxu0 %v836
    %900 = vmatpush1.bf16.msra.mxu0 %v835
    %901 = vmatprep.subr.bf16.mxu0 %v838
    %902 = vmatpush1.bf16.msra.mxu0 %v837
    %903 = vmatprep.subr.bf16.mxu0 %v840
    %904 = vmatpush1.bf16.msra.mxu0 %v839
    %905 = vmatprep.subr.bf16.mxu0 %v842
    %906 = vmatpush1.bf16.msra.mxu0 %v841
    %907 = vmatprep.mubr.bf16.mxu0 %v423
    %908 = vmatmul.mubr.bf16.gmra.mrb[0].mxu0 %v422
    %v909 = vpop.f32.mrb[0].mxu0
    %v910 = vadd.f32 %v708, %v909
    %v911 = vpop.f32.mrb[0].mxu0
    %v912 = vadd.f32 %v712, %v911
    %v913 = vpop.f32.mrb[0].mxu0
    %v914 = vadd.f32 %v708, %v913
    %v915 = vpop.f32.mrb[0].mxu0
    %v916 = vadd.f32 %v712, %v915
    %917 = vdwg.mxu0
    %v918 = vmax.f32 %v663, 0.0
    %v919 = vmax.f32 %v665, 0.0
    %v920 = vmax.f32 %v667, 0.0
    %v921 = vmax.f32 %v669, 0.0
    %v922 = vpack.c.bf16 %v920, %v918
    %v923 = vpack.c.bf16 %v921, %v919
    %v924 = vmax.f32 %v910, 0.0
    %v925 = vmax.f32 %v912, 0.0
    %v926 = vmax.f32 %v914, 0.0
    %v927 = vmax.f32 %v916, 0.0
    %v928 = vpack.c.bf16 %v926, %v924
    %v929 = vpack.c.bf16 %v927, %v925
    %v930 = vld [vmem:[#allocation7] sm:$0xf]
    %v931 = vld [vmem:[#allocation7 + $0x4] sm:$0xf]
    %v932 = vld [vmem:[#allocation7 + $0x8] sm:$0xf]
    %v933 = vld [vmem:[#allocation7 + $0xc] sm:$0xf]
    %v934 = vld [vmem:[#allocation7 + $0x10] sm:$0xf]
    %v935 = vld [vmem:[#allocation7 + $0x14] sm:$0xf]
    %v936 = vld [vmem:[#allocation7 + $0x18] sm:$0xf]
    %v937 = vld [vmem:[#allocation7 + $0x1c] sm:$0xf]
    %v938 = vld [vmem:[#allocation7 + $0x20] sm:$0xf]
    %v939 = vld [vmem:[#allocation7 + $0x24] sm:$0xf]
    %v940 = vld [vmem:[#allocation7 + $0x28] sm:$0xf]
    %v941 = vld [vmem:[#allocation7 + $0x2c] sm:$0xf]
    %v942 = vld [vmem:[#allocation7 + $0x30] sm:$0xf]
    %v943 = vld [vmem:[#allocation7 + $0x34] sm:$0xf]
    %v944 = vld [vmem:[#allocation7 + $0x38] sm:$0xf]
    %v945 = vld [vmem:[#allocation7 + $0x3c] sm:$0xf]
    %v946 = vld [vmem:[#allocation7 + $0x40] sm:$0xf]
    %v947 = vld [vmem:[#allocation7 + $0x44] sm:$0xf]
    %v948 = vld [vmem:[#allocation7 + $0x48] sm:$0xf]
    %v949 = vld [vmem:[#allocation7 + $0x4c] sm:$0xf]
    %v950 = vld [vmem:[#allocation7 + $0x50] sm:$0xf]
    %v951 = vld [vmem:[#allocation7 + $0x54] sm:$0xf]
    %v952 = vld [vmem:[#allocation7 + $0x58] sm:$0xf]
    %v953 = vld [vmem:[#allocation7 + $0x5c] sm:$0xf]
    %v954 = vld [vmem:[#allocation7 + $0x60] sm:$0xf]
    %v955 = vld [vmem:[#allocation7 + $0x64] sm:$0xf]
    %v956 = vld [vmem:[#allocation7 + $0x68] sm:$0xf]
    %v957 = vld [vmem:[#allocation7 + $0x6c] sm:$0xf]
    %v958 = vld [vmem:[#allocation7 + $0x70] sm:$0xf]
    %v959 = vld [vmem:[#allocation7 + $0x74] sm:$0xf]
    %v960 = vld [vmem:[#allocation7 + $0x78] sm:$0xf]
    %v961 = vld [vmem:[#allocation7 + $0x7c] sm:$0xf]
    %v962 = vld [vmem:[#allocation9] sm:$0xf]
    %v963 = vld [vmem:[#allocation9 + $0x4] sm:$0xf]
    %v964 = vld [vmem:[#allocation9 + $0x8] sm:$0xf]
    %v965 = vld [vmem:[#allocation9 + $0xc] sm:$0xf]
    %v966 = vld [vmem:[#allocation9 + $0x10] sm:$0xf]
    %v967 = vld [vmem:[#allocation9 + $0x14] sm:$0xf]
    %v968 = vld [vmem:[#allocation9 + $0x18] sm:$0xf]
    %v969 = vld [vmem:[#allocation9 + $0x1c] sm:$0xf]
    %v970 = vld [vmem:[#allocation9 + $0x20] sm:$0xf]
    %v971 = vld [vmem:[#allocation9 + $0x24] sm:$0xf]
    %v972 = vld [vmem:[#allocation9 + $0x28] sm:$0xf]
    %v973 = vld [vmem:[#allocation9 + $0x2c] sm:$0xf]
    %v974 = vld [vmem:[#allocation9 + $0x30] sm:$0xf]
    %v975 = vld [vmem:[#allocation9 + $0x34] sm:$0xf]
    %v976 = vld [vmem:[#allocation9 + $0x38] sm:$0xf]
    %v977 = vld [vmem:[#allocation9 + $0x3c] sm:$0xf]
    %v978 = vld [vmem:[#allocation9 + $0x40] sm:$0xf]
    %v979 = vld [vmem:[#allocation9 + $0x44] sm:$0xf]
    %v980 = vld [vmem:[#allocation9 + $0x48] sm:$0xf]
    %v981 = vld [vmem:[#allocation9 + $0x4c] sm:$0xf]
    %v982 = vld [vmem:[#allocation9 + $0x50] sm:$0xf]
    %v983 = vld [vmem:[#allocation9 + $0x54] sm:$0xf]
    %v984 = vld [vmem:[#allocation9 + $0x58] sm:$0xf]
    %v985 = vld [vmem:[#allocation9 + $0x5c] sm:$0xf]
    %v986 = vld [vmem:[#allocation9 + $0x60] sm:$0xf]
    %v987 = vld [vmem:[#allocation9 + $0x64] sm:$0xf]
    %v988 = vld [vmem:[#allocation9 + $0x68] sm:$0xf]
    %v989 = vld [vmem:[#allocation9 + $0x6c] sm:$0xf]
    %v990 = vld [vmem:[#allocation9 + $0x70] sm:$0xf]
    %v991 = vld [vmem:[#allocation9 + $0x74] sm:$0xf]
    %v992 = vld [vmem:[#allocation9 + $0x78] sm:$0xf]
    %v993 = vld [vmem:[#allocation9 + $0x7c] sm:$0xf]
    %v1026 = vunpack.c.l.b16 %v962
    %v1027 = vunpack.c.l.b16 %v963
    %v1028 = vunpack.c.l.b16 %v964
    %v1029 = vunpack.c.l.b16 %v965
    %v1030 = vunpack.c.l.b16 %v966
    %v1031 = vunpack.c.l.b16 %v967
    %v1032 = vunpack.c.l.b16 %v968
    %v1033 = vunpack.c.l.b16 %v969
    %v1034 = vunpack.c.l.b16 %v970
    %v1035 = vunpack.c.l.b16 %v971
    %v1036 = vunpack.c.l.b16 %v972
    %v1037 = vunpack.c.l.b16 %v973
    %v1038 = vunpack.c.l.b16 %v974
    %v1039 = vunpack.c.l.b16 %v975
    %v1040 = vunpack.c.l.b16 %v976
    %v1041 = vunpack.c.l.b16 %v977
    %v1042 = vunpack.c.l.b16 %v978
    %v1043 = vunpack.c.l.b16 %v979
    %v1044 = vunpack.c.l.b16 %v980
    %v1045 = vunpack.c.l.b16 %v981
    %v1046 = vunpack.c.l.b16 %v982
    %v1047 = vunpack.c.l.b16 %v983
    %v1048 = vunpack.c.l.b16 %v984
    %v1049 = vunpack.c.l.b16 %v985
    %v1050 = vunpack.c.l.b16 %v986
    %v1051 = vunpack.c.l.b16 %v987
    %v1052 = vunpack.c.l.b16 %v988
    %v1053 = vunpack.c.l.b16 %v989
    %v1054 = vunpack.c.l.b16 %v990
    %v1055 = vunpack.c.l.b16 %v991
    %v1056 = vunpack.c.l.b16 %v992
    %v1057 = vunpack.c.l.b16 %v993
    %v1058 = vpack.c.b16 %v1027, %v1026
    %v1059 = vpack.c.b16 %v1029, %v1028
    %v1060 = vpack.c.b16 %v1031, %v1030
    %v1061 = vpack.c.b16 %v1033, %v1032
    %v1062 = vpack.c.b16 %v1035, %v1034
    %v1063 = vpack.c.b16 %v1037, %v1036
    %v1064 = vpack.c.b16 %v1039, %v1038
    %v1065 = vpack.c.b16 %v1041, %v1040
    %v1066 = vpack.c.b16 %v1043, %v1042
    %v1067 = vpack.c.b16 %v1045, %v1044
    %v1068 = vpack.c.b16 %v1047, %v1046
    %v1069 = vpack.c.b16 %v1049, %v1048
    %v1070 = vpack.c.b16 %v1051, %v1050
    %v1071 = vpack.c.b16 %v1053, %v1052
    %v1072 = vpack.c.b16 %v1055, %v1054
    %v1073 = vpack.c.b16 %v1057, %v1056
    %1090 = vmatprep.subr.bf16.mxu0 0
    %1091 = vmatpush1.bf16.msra.mxu0 %v1058
    %1092 = vmatprep.subr.bf16.mxu0 0
    %1093 = vmatpush1.bf16.msra.mxu0 %v1059
    %1094 = vmatprep.subr.bf16.mxu0 0
    %1095 = vmatpush1.bf16.msra.mxu0 %v1060
    %1096 = vmatprep.subr.bf16.mxu0 0
    %1097 = vmatpush1.bf16.msra.mxu0 %v1061
    %1098 = vmatprep.subr.bf16.mxu0 0
    %1099 = vmatpush1.bf16.msra.mxu0 %v1062
    %1100 = vmatprep.subr.bf16.mxu0 0
    %1101 = vmatpush1.bf16.msra.mxu0 %v1063
    %1102 = vmatprep.subr.bf16.mxu0 0
    %1103 = vmatpush1.bf16.msra.mxu0 %v1064
    %1104 = vmatprep.subr.bf16.mxu0 0
    %1105 = vmatpush1.bf16.msra.mxu0 %v1065
    %1106 = vmatprep.subr.bf16.mxu0 0
    %1107 = vmatpush1.bf16.msra.mxu0 %v1066
    %1108 = vmatprep.subr.bf16.mxu0 0
    %1109 = vmatpush1.bf16.msra.mxu0 %v1067
    %1110 = vmatprep.subr.bf16.mxu0 0
    %1111 = vmatpush1.bf16.msra.mxu0 %v1068
    %1112 = vmatprep.subr.bf16.mxu0 0
    %1113 = vmatpush1.bf16.msra.mxu0 %v1069
    %1114 = vmatprep.subr.bf16.mxu0 0
    %1115 = vmatpush1.bf16.msra.mxu0 %v1070
    %1116 = vmatprep.subr.bf16.mxu0 0
    %1117 = vmatpush1.bf16.msra.mxu0 %v1071
    %1118 = vmatprep.subr.bf16.mxu0 0
    %1119 = vmatpush1.bf16.msra.mxu0 %v1072
    %1120 = vmatprep.subr.bf16.mxu0 0
    %1121 = vmatpush1.bf16.msra.mxu0 %v1073
    %1122 = vmatprep.mubr.bf16.mxu0 %v929
    %1123 = vmatmul.mubr.bf16.gmra.mrb[0].mxu0 %v928
    %v1124 = vpop.f32.mrb[0].mxu0
    %v1125 = vadd.f32 0.0, %v1124
    %v1126 = vpop.f32.mrb[0].mxu0
    %v1127 = vpop.f32.mrb[0].mxu0
    %v1128 = vadd.f32 0.0, %v1127
    %v1129 = vpop.f32.mrb[0].mxu0
    %1130 = vdwg.mxu0
    %v1163 = vunpack.c.l.b16 %v930
    %v1164 = vunpack.c.l.b16 %v931
    %v1165 = vunpack.c.l.b16 %v932
    %v1166 = vunpack.c.l.b16 %v933
    %v1167 = vunpack.c.l.b16 %v934
    %v1168 = vunpack.c.l.b16 %v935
    %v1169 = vunpack.c.l.b16 %v936
    %v1170 = vunpack.c.l.b16 %v937
    %v1171 = vunpack.c.l.b16 %v938
    %v1172 = vunpack.c.l.b16 %v939
    %v1173 = vunpack.c.l.b16 %v940
    %v1174 = vunpack.c.l.b16 %v941
    %v1175 = vunpack.c.l.b16 %v942
    %v1176 = vunpack.c.l.b16 %v943
    %v1177 = vunpack.c.l.b16 %v944
    %v1178 = vunpack.c.l.b16 %v945
    %v1179 = vunpack.c.l.b16 %v946
    %v1180 = vunpack.c.l.b16 %v947
    %v1181 = vunpack.c.l.b16 %v948
    %v1182 = vunpack.c.l.b16 %v949
    %v1183 = vunpack.c.l.b16 %v950
    %v1184 = vunpack.c.l.b16 %v951
    %v1185 = vunpack.c.l.b16 %v952
    %v1186 = vunpack.c.l.b16 %v953
    %v1187 = vunpack.c.l.b16 %v954
    %v1188 = vunpack.c.l.b16 %v955
    %v1189 = vunpack.c.l.b16 %v956
    %v1190 = vunpack.c.l.b16 %v957
    %v1191 = vunpack.c.l.b16 %v958
    %v1192 = vunpack.c.l.b16 %v959
    %v1193 = vunpack.c.l.b16 %v960
    %v1194 = vunpack.c.l.b16 %v961
    %v1195 = vpack.c.b16 %v1164, %v1163
    %v1196 = vpack.c.b16 %v1166, %v1165
    %v1197 = vpack.c.b16 %v1168, %v1167
    %v1198 = vpack.c.b16 %v1170, %v1169
    %v1199 = vpack.c.b16 %v1172, %v1171
    %v1200 = vpack.c.b16 %v1174, %v1173
    %v1201 = vpack.c.b16 %v1176, %v1175
    %v1202 = vpack.c.b16 %v1178, %v1177
    %v1203 = vpack.c.b16 %v1180, %v1179
    %v1204 = vpack.c.b16 %v1182, %v1181
    %v1205 = vpack.c.b16 %v1184, %v1183
    %v1206 = vpack.c.b16 %v1186, %v1185
    %v1207 = vpack.c.b16 %v1188, %v1187
    %v1208 = vpack.c.b16 %v1190, %v1189
    %v1209 = vpack.c.b16 %v1192, %v1191
    %v1210 = vpack.c.b16 %v1194, %v1193
    %1227 = vmatprep.subr.bf16.mxu0 0
    %1228 = vmatpush1.bf16.msra.mxu0 %v1195
    %1229 = vmatprep.subr.bf16.mxu0 0
    %1230 = vmatpush1.bf16.msra.mxu0 %v1196
    %1231 = vmatprep.subr.bf16.mxu0 0
    %1232 = vmatpush1.bf16.msra.mxu0 %v1197
    %1233 = vmatprep.subr.bf16.mxu0 0
    %1234 = vmatpush1.bf16.msra.mxu0 %v1198
    %1235 = vmatprep.subr.bf16.mxu0 0
    %1236 = vmatpush1.bf16.msra.mxu0 %v1199
    %1237 = vmatprep.subr.bf16.mxu0 0
    %1238 = vmatpush1.bf16.msra.mxu0 %v1200
    %1239 = vmatprep.subr.bf16.mxu0 0
    %1240 = vmatpush1.bf16.msra.mxu0 %v1201
    %1241 = vmatprep.subr.bf16.mxu0 0
    %1242 = vmatpush1.bf16.msra.mxu0 %v1202
    %1243 = vmatprep.subr.bf16.mxu0 0
    %1244 = vmatpush1.bf16.msra.mxu0 %v1203
    %1245 = vmatprep.subr.bf16.mxu0 0
    %1246 = vmatpush1.bf16.msra.mxu0 %v1204
    %1247 = vmatprep.subr.bf16.mxu0 0
    %1248 = vmatpush1.bf16.msra.mxu0 %v1205
    %1249 = vmatprep.subr.bf16.mxu0 0
    %1250 = vmatpush1.bf16.msra.mxu0 %v1206
    %1251 = vmatprep.subr.bf16.mxu0 0
    %1252 = vmatpush1.bf16.msra.mxu0 %v1207
    %1253 = vmatprep.subr.bf16.mxu0 0
    %1254 = vmatpush1.bf16.msra.mxu0 %v1208
    %1255 = vmatprep.subr.bf16.mxu0 0
    %1256 = vmatpush1.bf16.msra.mxu0 %v1209
    %1257 = vmatprep.subr.bf16.mxu0 0
    %1258 = vmatpush1.bf16.msra.mxu0 %v1210
    %1259 = vmatprep.mubr.bf16.mxu0 %v923
    %1260 = vmatmul.mubr.bf16.gmra.mrb[0].mxu0 %v922
    %v1261 = vpop.f32.mrb[0].mxu0
    %v1262 = vadd.f32 %v1125, %v1261
    %v1263 = vpop.f32.mrb[0].mxu0
    %v1264 = vpop.f32.mrb[0].mxu0
    %v1265 = vadd.f32 %v1128, %v1264
    %v1266 = vpop.f32.mrb[0].mxu0
    %1267 = vdwg.mxu0
    %v1268 = vld [vmem:[%s9] sm:$0x1]
    %v1270 = vlaneseq
    %v1271 = vshrl.u32 %v1270, 7
    %v1272 = vsub.s32 0, %v1271
    %v1273 = vrot.slane %v1268, %v1272
    %v1275 = vadd.f32 %v1262, %v1273
    %v1276 = vadd.f32 %v1265, %v1273
    %1277 = vst [vmem:[%s10] sm:$0xff] %v1275
    %1278 = vst [vmem:[%s10 + $0x8] sm:$0xff] %v1276
    // Predicated region
    $region62: #{critic_forward.1} parent=1 // pred_check
      _
    $region63: #{critic_forward.1} parent=1 // pred_check_branch
      %1280 = sbr.rel (0) target = $region65
    $region64: #{critic_forward.1} parent=1 // pred_region
      _
    $region65: #{critic_forward.1} parent=1 // pred_fallthru
      _
    // Predicated region
    $region66: #{critic_forward.1} parent=1 // pred_check
      _
    $region67: #{critic_forward.1} parent=1 // pred_check_branch
      %1282 = sbr.rel (0) target = $region69
    $region68: #{critic_forward.1} parent=1 // pred_region
      _
    $region69: #{critic_forward.1} parent=1 // pred_fallthru
      _
    %1283 = vsyncpa [#allocation3], 1
    %1284 = vsyncpa [#allocation5], 1
    %1285 = vsyncpa [#allocation8], 1

</llo_original>
